<compile_context>
chip_gen: v7x
topology: tpu7x:2x2x1
jax: 0.10.0
libtpu: 0.0.40
codegen_flags: <defaults>
</compile_context>

<pallas_src>
import functools
import math

import jax
import jax.numpy as jnp
from jax.experimental import pallas as pl
from jax.experimental.pallas import tpu as pltpu


def _round_up(x, m):
    return (x + m - 1) // m * m


def _pad2(a, rows, cols):
    r, c = a.shape
    return jnp.pad(a, ((0, rows - r), (0, cols - c)))


def _vmem_capacity_bytes():
    """Physical per-core VMEM, with a conservative (v7x-sized) fallback."""
    try:
        return int(pltpu.get_tpu_info().vmem_capacity_bytes)
    except Exception:
        return 64 * 1024 * 1024


def make_gnn_kernel(num_hidden: int, matmul_dtype):
    """relu(adj @ xw + nb) -> [Linear+ReLU]*num_hidden -> Linear."""

    def kernel(adj_ref, xw_ref, nb_ref, *rest):
        # rest = [wh_0, bh_0, ..., wh_{k-1}, bh_{k-1}, wo, bo, out_ref, acc_ref]
        acc_ref = rest[-1]
        out_ref = rest[-2]
        bo_ref = rest[-3]
        wo_ref = rest[-4]
        hidden_refs = rest[:-4]

        k = pl.program_id(1)

        @pl.when(k == 0)
        def _():
            acc_ref[...] = jnp.zeros_like(acc_ref)

        # Message-passing partial sum for this (row tile, K tile):
        #   acc += A[rows, k_tile] @ (x @ W_msg^T)[k_tile, :]
        acc_ref[...] += jnp.dot(adj_ref[...], xw_ref[...],
                                preferred_element_type=jnp.float32)

        @pl.when(k == pl.num_programs(1) - 1)
        def _():
            # GraphConv output: self/root + node-index terms are folded into nb.
            h = jnp.maximum(acc_ref[...] + nb_ref[...], 0.0)      # F.relu

            # Hidden Linear + ReLU layers (static unroll over refs).
            for j in range(num_hidden):
                w = hidden_refs[2 * j][...]
                b = hidden_refs[2 * j + 1][...]
                h = jnp.maximum(
                    jnp.dot(h.astype(matmul_dtype), w,
                            preferred_element_type=jnp.float32) + b, 0.0)

            # Output layer (no activation), lane-dense padded store.
            out_ref[...] = (jnp.dot(h.astype(matmul_dtype), wo_ref[...],
                                    preferred_element_type=jnp.float32)
                            + bo_ref[...])

    return kernel


@functools.partial(jax.jit,
                   static_argnames=("tile_rows", "tile_k", "matmul_dtype"))
def custom_gnn_forward(feature_data, edge_index, edge_weights, params,
                       *, tile_rows=None, tile_k=None,
                       matmul_dtype=jnp.bfloat16):
    """Pallas-backed CustomGNN.forward.

    feature_data : (N, F) float32
    edge_index   : (2, E) int32, row 0 = source nodes, row 1 = target nodes
    edge_weights : (E,) float32
    params       : dict with PyTorch-layout weights (out, in) and biases (out,)
    """
    N, F = feature_data.shape
    src, dst = edge_index[0], edge_index[1]

    W1, b1 = params["input_W"], params["input_b"]        # (H0, 2F+1), (H0,)
    hidden = params["hidden"]                            # list of (W, b)
    Wo, bo = params["output_W"], params["output_b"]      # (O, Hk), (O,)
    H0 = W1.shape[0]
    O = Wo.shape[0]
    num_hidden = len(hidden)

    lane = 128
    mdt = matmul_dtype
    mdt_size = jnp.dtype(mdt).itemsize

    # Tile sizes: tm 16-aligned (bf16 sublane packing), tk 128-aligned (lanes /
    # MXU contraction).  With K-tiling the per-tile VMEM is independent of N,
    # so the same defaults work on v5e/v6e (128 MiB) and v7x (64 MiB).
    tm = 512 if tile_rows is None else tile_rows
    tk = 512 if tile_k is None else tile_k
    tm = max(16, min(_round_up(tm, 16), _round_up(N, 16)))
    tk = max(lane, min(_round_up(tk, lane), _round_up(N, lane)))
    Npad = _round_up(N, math.lcm(tm, tk))
    Hp0 = _round_up(H0, lane)
    Op = _round_up(O, lane)

    # ---- wrapper glue (fused under this jit) --------------------------------
    # Densified adjacency (dst <- src scatter-add of edge weights).
    # TODO(synk): sparse edge-list path with scalar-prefetched CSR offsets.
    adj = jnp.zeros((Npad, Npad), jnp.float32).at[dst, src].add(edge_weights)

    x = feature_data.astype(jnp.float32)
    w_self = W1[:, :F].T            # (F, H0)  acts on x (root term)
    w_msg = W1[:, F:2 * F].T        # (F, H0)  acts on aggregated messages
    w_idx = W1[:, 2 * F]            # (H0,)    node-index column

    # Reassociated GraphConv: kernel only does adj @ xw + nb.
    xw = _pad2(x @ w_msg, Npad, Hp0).astype(mdt)                    # (Npad, Hp0)
    node_idx = jnp.arange(N, dtype=jnp.float32)[:, None] / N
    nb = _pad2(x @ w_self + node_idx * w_idx[None, :] + b1[None, :],
               Npad, Hp0)                                            # f32 bias

    vmem_cap = _vmem_capacity_bytes()
    adj_depth = 3 if vmem_cap >= 96 * 1024 * 1024 else 2             # v5e/v6e vs v7x

    def resident(shape):
        # Block index never changes -> single buffer, fetched once.
        return pl.BlockSpec(shape, lambda i, k: (0, 0),
                            pipeline_mode=pl.Buffered(1))

    kernel_inputs = [adj.astype(mdt), xw, nb]
    in_specs = [
        pl.BlockSpec((tm, tk), lambda i, k: (i, k),
                     pipeline_mode=pl.Buffered(adj_depth)),          # adj stream
        pl.BlockSpec((tk, Hp0), lambda i, k: (k, 0)),                # xw K tile
        pl.BlockSpec((tm, Hp0), lambda i, k: (i, 0)),                # per-node bias
    ]

    Hp_prev = Hp0
    for (W, b) in hidden:
        Hp_out = _round_up(W.shape[0], lane)
        kernel_inputs.append(_pad2(W.T, Hp_prev, Hp_out).astype(mdt))
        kernel_inputs.append(_pad2(b[None, :], 1, Hp_out))
        in_specs.append(resident((Hp_prev, Hp_out)))
        in_specs.append(resident((1, Hp_out)))
        Hp_prev = Hp_out

    kernel_inputs.append(_pad2(Wo.T, Hp_prev, Op).astype(mdt))
    kernel_inputs.append(_pad2(bo[None, :], 1, Op))
    in_specs.append(resident((Hp_prev, Op)))
    in_specs.append(resident((1, Op)))

    out_specs = pl.BlockSpec((tm, Op), lambda i, k: (i, 0))
    grid = (Npad // tm, Npad // tk)

    # VMEM budget: streamed tiles (x buffer depth) + single-buffered weights +
    # accumulator + slack for live intermediates; capped below physical VMEM
    # with headroom for Mosaic internal scratch.
    weight_bytes = sum(a.size * a.dtype.itemsize for a in kernel_inputs[3:])
    est = (adj_depth * tm * tk * mdt_size          # adjacency buffers
           + 2 * tk * Hp0 * mdt_size               # xw buffers
           + 2 * tm * Hp0 * 4                      # nb buffers
           + 2 * tm * Op * 4                       # output buffers
           + tm * Hp0 * 4                          # f32 accumulator
           + weight_bytes                          # Buffered(1) weights/biases
           + 8 * tm * max(Hp0, Op) * 4)            # live intermediates slack
    headroom = 16 * 1024 * 1024
    vmem_limit = int(min(max(vmem_cap - headroom, 16 * 1024 * 1024),
                         max(16 * 1024 * 1024, int(1.5 * est))))

    out = pl.pallas_call(
        make_gnn_kernel(num_hidden, mdt),
        out_shape=jax.ShapeDtypeStruct((Npad, Op), jnp.float32),
        grid_spec=pltpu.PrefetchScalarGridSpec(
            num_scalar_prefetch=0,
            grid=grid,
            in_specs=in_specs,
            out_specs=out_specs,
            scratch_shapes=[pltpu.VMEM((tm, Hp0), jnp.float32)],
        ),
        compiler_params=pltpu.CompilerParams(
            dimension_semantics=("parallel", "arbitrary"),
            vmem_limit_bytes=vmem_limit,
        ),
    )(*kernel_inputs)

    return out[:N, :O]


def reference_forward(feature_data, edge_index, edge_weights, params):
    """Pure-JAX f32 reference matching the PyTorch semantics exactly."""
    N, F = feature_data.shape
    src, dst = edge_index[0], edge_index[1]
    adj = jnp.zeros((N, N), jnp.float32).at[dst, src].add(edge_weights)
    msg = adj @ feature_data
    node_idx = (jnp.arange(N, dtype=jnp.float32) / N).reshape(N, 1)
    out_msg = jnp.concatenate([feature_data, msg, node_idx], axis=1)
    h = jax.nn.relu(out_msg @ params["input_W"].T + params["input_b"])
    for (W, b) in params["hidden"]:
        h = jax.nn.relu(h @ W.T + b)
    return h @ params["output_W"].T + params["output_b"]


if __name__ == "__main__":
    key = jax.random.PRNGKey(0)

    # Small shapes consistent with the module's forward.
    N = 16            # number of graph nodes
    F = 4             # input_dims (per-node feature dim)
    hidden_dims = [32, 32]
    output_dims = 8
    E = 24            # number of edges

    ks = jax.random.split(key, 12)

    feature_data = jax.random.normal(ks[0], (N, F), dtype=jnp.float32)
    src = jax.random.randint(ks[1], (E,), 0, N, dtype=jnp.int32)
    dst = jax.random.randint(ks[2], (E,), 0, N, dtype=jnp.int32)
    edge_index = jnp.stack([src, dst], axis=0)               # (2, E)
    edge_weights = jax.random.uniform(ks[3], (E,), dtype=jnp.float32)

    # Deterministic parameter init (PyTorch Linear layout: W is (out, in)).
    in0 = F * 2 + 1   # input_dims * 2 + 1
    params = {
        "input_W": 0.2 * jax.random.normal(ks[4], (hidden_dims[0], in0), jnp.float32),
        "input_b": 0.1 * jax.random.normal(ks[5], (hidden_dims[0],), jnp.float32),
        "hidden": [],
        "output_W": 0.2 * jax.random.normal(ks[6], (output_dims, hidden_dims[-1]), jnp.float32),
        "output_b": 0.1 * jax.random.normal(ks[7], (output_dims,), jnp.float32),
    }
    kidx = 8
    for i in range(len(hidden_dims) - 1):
        W = 0.2 * jax.random.normal(ks[kidx], (hidden_dims[i + 1], hidden_dims[i]), jnp.float32)
        b = 0.1 * jax.random.normal(ks[kidx + 1], (hidden_dims[i + 1],), jnp.float32)
        params["hidden"].append((W, b))
        kidx += 2

    ref = reference_forward(feature_data, edge_index, edge_weights, params)

    # f32 matmul path: tight numerical check against the reference.
    out_f32 = custom_gnn_forward(feature_data, edge_index, edge_weights, params,
                                 matmul_dtype=jnp.float32)
    out_f32 = jax.block_until_ready(out_f32)
    if not jnp.allclose(out_f32, ref, atol=1e-3, rtol=1e-3):
        raise AssertionError("Pallas kernel (f32) does not match reference")

    # bf16 matmul path (default for v5e/v6e/v7x): loose check.
    out_bf16 = custom_gnn_forward(feature_data, edge_index, edge_weights, params)
    out_bf16 = jax.block_until_ready(out_bf16)
    if not jnp.allclose(out_bf16, ref, atol=1e-1, rtol=1e-1):
        raise AssertionError("Pallas kernel (bf16) deviates too far from reference")

    print("KERNEL_OK")
</pallas_src>

<mosaic_0001>
module attributes {stable_mosaic.version = 11 : i64} {
  func.func @kernel(%arg0: i32, %arg1: i32, %arg2: memref<16x128xf32, #tpu.memory_space<vmem>>, %arg3: memref<128x128xf32, #tpu.memory_space<vmem>>, %arg4: memref<16x128xf32, #tpu.memory_space<vmem>>, %arg5: memref<128x128xf32, #tpu.memory_space<vmem>>, %arg6: memref<1x128xf32, #tpu.memory_space<vmem>>, %arg7: memref<128x128xf32, #tpu.memory_space<vmem>>, %arg8: memref<1x128xf32, #tpu.memory_space<vmem>>, %arg9: memref<16x128xf32, #tpu.memory_space<vmem>>, %arg10: memref<16x128xf32, #tpu.memory_space<vmem>>) attributes {dimension_semantics = [#tpu.dimension_semantics<parallel>, #tpu.dimension_semantics<arbitrary>], iteration_bounds = array<i64: 8, 1>, scalar_prefetch = 0 : i64, scratch_operands = 1 : i64, tpu.core_type = #tpu.core_type<tc>, window_params = [{pipeline_mode = #tpu.pipeline_mode<double_buffered>, transform_indices = @transform_0, window_bounds = array<i64: 16, 128>}, {transform_indices = @transform_1, window_bounds = array<i64: 128, 128>}, {transform_indices = @transform_2, window_bounds = array<i64: 16, 128>}, {pipeline_mode = #tpu.pipeline_mode<synchronous>, transform_indices = @transform_3, window_bounds = array<i64: 128, 128>}, {pipeline_mode = #tpu.pipeline_mode<synchronous>, transform_indices = @transform_4, window_bounds = array<i64: 1, 128>}, {pipeline_mode = #tpu.pipeline_mode<synchronous>, transform_indices = @transform_5, window_bounds = array<i64: 128, 128>}, {pipeline_mode = #tpu.pipeline_mode<synchronous>, transform_indices = @transform_6, window_bounds = array<i64: 1, 128>}, {transform_indices = @transform_7, window_bounds = array<i64: 16, 128>}]} {
    %c0_i32 = arith.constant 0 : i32
    %0 = arith.cmpi eq, %arg1, %c0_i32 : i32
    %1 = arith.extui %0 : i1 to i32
    %c0_i32_0 = arith.constant 0 : i32
    %2 = arith.cmpi ne, %1, %c0_i32_0 : i32
    scf.if %2 {
      %cst_10 = arith.constant 0.000000e+00 : f32
      %12 = vector.broadcast %cst_10 : f32 to vector<16x128xf32>
      %c0_11 = arith.constant 0 : index
      %c0_12 = arith.constant 0 : index
      %13 = vector.load %arg10[%c0_11, %c0_12] : memref<16x128xf32, #tpu.memory_space<vmem>>, vector<16x128xf32>
      tpu.vector_store %arg10[%c0_11, %c0_12], %12 {strides = array<i32>} : memref<16x128xf32, #tpu.memory_space<vmem>>, vector<16x128xf32>,
    } else {
    }
    %c0 = arith.constant 0 : index
    %c0_1 = arith.constant 0 : index
    %3 = vector.load %arg10[%c0, %c0_1] : memref<16x128xf32, #tpu.memory_space<vmem>>, vector<16x128xf32>
    %c0_2 = arith.constant 0 : index
    %c0_3 = arith.constant 0 : index
    %4 = vector.load %arg2[%c0_2, %c0_3] : memref<16x128xf32, #tpu.memory_space<vmem>>, vector<16x128xf32>
    %c0_4 = arith.constant 0 : index
    %c0_5 = arith.constant 0 : index
    %5 = vector.load %arg3[%c0_4, %c0_5] : memref<128x128xf32, #tpu.memory_space<vmem>>, vector<128x128xf32>
    %cst = arith.constant dense<0.000000e+00> : vector<16x128xf32>
    %6 = tpu.matmul %4, %5, %cst {dimension_numbers = #tpu.dot_dimension_numbers<[1], [0], [0], [1], [0, 0, 1, 1], [], []>} : vector<16x128xf32>, vector<128x128xf32>, vector<16x128xf32> -> vector<16x128xf32>
    %7 = arith.addf %3, %6 : vector<16x128xf32>
    %c0_6 = arith.constant 0 : index
    %c0_7 = arith.constant 0 : index
    %8 = vector.load %arg10[%c0_6, %c0_7] : memref<16x128xf32, #tpu.memory_space<vmem>>, vector<16x128xf32>
    tpu.vector_store %arg10[%c0_6, %c0_7], %7 {strides = array<i32>} : memref<16x128xf32, #tpu.memory_space<vmem>>, vector<16x128xf32>,
    %c0_i32_8 = arith.constant 0 : i32
    %9 = arith.cmpi eq, %arg1, %c0_i32_8 : i32
    %10 = arith.extui %9 : i1 to i32
    %c0_i32_9 = arith.constant 0 : i32
    %11 = arith.cmpi ne, %10, %c0_i32_9 : i32
    scf.if %11 {
      %c0_10 = arith.constant 0 : index
      %c0_11 = arith.constant 0 : index
      %12 = vector.load %arg10[%c0_10, %c0_11] : memref<16x128xf32, #tpu.memory_space<vmem>>, vector<16x128xf32>
      %c0_12 = arith.constant 0 : index
      %c0_13 = arith.constant 0 : index
      %13 = vector.load %arg4[%c0_12, %c0_13] : memref<16x128xf32, #tpu.memory_space<vmem>>, vector<16x128xf32>
      %14 = arith.addf %12, %13 : vector<16x128xf32>
      %cst_14 = arith.constant 0.000000e+00 : f32
      %15 = vector.broadcast %cst_14 : f32 to vector<16x128xf32>
      %16 = arith.maximumf %14, %15 : vector<16x128xf32>
      %c0_15 = arith.constant 0 : index
      %c0_16 = arith.constant 0 : index
      %17 = vector.load %arg5[%c0_15, %c0_16] : memref<128x128xf32, #tpu.memory_space<vmem>>, vector<128x128xf32>
      %c0_17 = arith.constant 0 : index
      %c0_18 = arith.constant 0 : index
      %18 = vector.load %arg6[%c0_17, %c0_18] : memref<1x128xf32, #tpu.memory_space<vmem>>, vector<1x128xf32>
      %cst_19 = arith.constant dense<0.000000e+00> : vector<16x128xf32>
      %19 = tpu.matmul %16, %17, %cst_19 {dimension_numbers = #tpu.dot_dimension_numbers<[1], [0], [0], [1], [0, 0, 1, 1], [], []>} : vector<16x128xf32>, vector<128x128xf32>, vector<16x128xf32> -> vector<16x128xf32>
      %20 = vector.broadcast %18 : vector<1x128xf32> to vector<16x128xf32>
      %21 = arith.addf %19, %20 : vector<16x128xf32>
      %cst_20 = arith.constant 0.000000e+00 : f32
      %22 = vector.broadcast %cst_20 : f32 to vector<16x128xf32>
      %23 = arith.maximumf %21, %22 : vector<16x128xf32>
      %c0_21 = arith.constant 0 : index
      %c0_22 = arith.constant 0 : index
      %24 = vector.load %arg7[%c0_21, %c0_22] : memref<128x128xf32, #tpu.memory_space<vmem>>, vector<128x128xf32>
      %cst_23 = arith.constant dense<0.000000e+00> : vector<16x128xf32>
      %25 = tpu.matmul %23, %24, %cst_23 {dimension_numbers = #tpu.dot_dimension_numbers<[1], [0], [0], [1], [0, 0, 1, 1], [], []>} : vector<16x128xf32>, vector<128x128xf32>, vector<16x128xf32> -> vector<16x128xf32>
      %c0_24 = arith.constant 0 : index
      %c0_25 = arith.constant 0 : index
      %26 = vector.load %arg8[%c0_24, %c0_25] : memref<1x128xf32, #tpu.memory_space<vmem>>, vector<1x128xf32>
      %27 = vector.broadcast %26 : vector<1x128xf32> to vector<16x128xf32>
      %28 = arith.addf %25, %27 : vector<16x128xf32>
      %c0_26 = arith.constant 0 : index
      %c0_27 = arith.constant 0 : index
      %29 = vector.load %arg9[%c0_26, %c0_27] : memref<16x128xf32, #tpu.memory_space<vmem>>, vector<16x128xf32>
      tpu.vector_store %arg9[%c0_26, %c0_27], %28 {strides = array<i32>} : memref<16x128xf32, #tpu.memory_space<vmem>>, vector<16x128xf32>,
    } else {
    }
    return
  }
  func.func @transform_0(%arg0: i32, %arg1: i32) -> (i32, i32) {
    %c0_i32 = arith.constant 0 : i32
    return %arg0, %arg1 : i32, i32
  }
  func.func @transform_1(%arg0: i32, %arg1: i32) -> (i32, i32) {
    %c0_i32 = arith.constant 0 : i32
    %c0_i32_0 = arith.constant 0 : i32
    return %arg1, %c0_i32 : i32, i32
  }
  func.func @transform_2(%arg0: i32, %arg1: i32) -> (i32, i32) {
    %c0_i32 = arith.constant 0 : i32
    %c0_i32_0 = arith.constant 0 : i32
    return %arg0, %c0_i32 : i32, i32
  }
  func.func @transform_3(%arg0: i32, %arg1: i32) -> (i32, i32) {
    %c0_i32 = arith.constant 0 : i32
    %c0_i32_0 = arith.constant 0 : i32
    %c0_i32_1 = arith.constant 0 : i32
    return %c0_i32, %c0_i32_0 : i32, i32
  }
  func.func @transform_4(%arg0: i32, %arg1: i32) -> (i32, i32) {
    %c0_i32 = arith.constant 0 : i32
    %c0_i32_0 = arith.constant 0 : i32
    %c0_i32_1 = arith.constant 0 : i32
    return %c0_i32, %c0_i32_0 : i32, i32
  }
  func.func @transform_5(%arg0: i32, %arg1: i32) -> (i32, i32) {
    %c0_i32 = arith.constant 0 : i32
    %c0_i32_0 = arith.constant 0 : i32
    %c0_i32_1 = arith.constant 0 : i32
    return %c0_i32, %c0_i32_0 : i32, i32
  }
  func.func @transform_6(%arg0: i32, %arg1: i32) -> (i32, i32) {
    %c0_i32 = arith.constant 0 : i32
    %c0_i32_0 = arith.constant 0 : i32
    %c0_i32_1 = arith.constant 0 : i32
    return %c0_i32, %c0_i32_0 : i32, i32
  }
  func.func @transform_7(%arg0: i32, %arg1: i32) -> (i32, i32) {
    %c0_i32 = arith.constant 0 : i32
    %c0_i32_0 = arith.constant 0 : i32
    return %arg0, %c0_i32 : i32, i32
  }
}

</mosaic_0001>

<llo_original>
// kernel: custom_gnn_forward.1
$region0: #{custom_gnn_forward.1}
  #allocation0 [shape = 'u32[]', space=smem, size = 0x4, offset = 0x4, fixed_abs, tag = 'smem constant byte address 0x4 - core index']
  #allocation1 [shape = 'u32[144,128]{1,0:T(1,128)}', space=vmem, size = 0x12000, scoped, tag = 'internal scratch']
  #allocation2 [shape = 'f32[16,128]{1,0:T(8,128)}', space=vmem, size = 0x2000, scoped, tag = 'scratch operand']
  %s0 = inlined_call_operand.vmem [shape: f32[128,128], index: 0, kind: input, shape index: {}]
  %s1 = inlined_call_operand.vmem [shape: f32[128,128], index: 1, kind: input, shape index: {}]
  %s2 = inlined_call_operand.vmem [shape: f32[128,128], index: 2, kind: input, shape index: {}]
  %s3 = inlined_call_operand.vmem [shape: f32[128,128], index: 3, kind: input, shape index: {}]
  %s4 = inlined_call_operand.vmem [shape: f32[1,128], index: 4, kind: input, shape index: {}]
  %s5 = inlined_call_operand.vmem [shape: f32[128,128], index: 5, kind: input, shape index: {}]
  %s6 = inlined_call_operand.vmem [shape: f32[1,128], index: 6, kind: input, shape index: {}]
  %s7 = inlined_call_operand.vmem [shape: f32[128,128], index: 7, kind: output, shape index: {}]
  %s8 = sld [smem:[#allocation0]]
  $region69: #{custom_gnn_forward.1} parent=0
    _
  %s10 = ssub.s32 1, %s8
  %s11 = scalar_select 0, %s10, %s8
  loop: start=0, step=1, limit=10
  $region2: #{custom_gnn_forward.1} parent=0 // loop_pre_header
    _
  $region3: #{custom_gnn_forward.1} parent=0 // loop_header
    %s13 = sphi 0, %s17
    %p14 = scmp.ge.s32.totalorder %s13, 10
    %s20 = sphi 0, %s32
    %s21 = sphi 0, %s28
    %s22 = sphi 0, %s20
    %s23 = sphi 0, %s21
    %s24 = sphi 0, %s22
    %s25 = sphi 0, %s23
    %s37 = sphi 0, %s39
    %s40 = sphi 0, %s37
    %s41 = sphi 0, %s40
    %s57 = sphi 0, %s41
    %s63 = sphi 0, %s65
    %s66 = sphi 0, %s63
    %s67 = sphi 0, %s66
    %s83 = sphi 0, %s67
    %s89 = sphi 0, %s91
    %s92 = sphi 0, %s89
    %s93 = sphi 0, %s92
    %s109 = sphi 0, %s93
    %s113 = sphi 0, %s113
    %s115 = sphi 0, %s113
    %s116 = sphi 0, %s115
    %s130 = sphi 0, %s116
    %s134 = sphi 0, %s134
    %s136 = sphi 0, %s134
    %s137 = sphi 0, %s136
    %s151 = sphi 0, %s137
    %s155 = sphi 0, %s155
    %s157 = sphi 0, %s155
    %s158 = sphi 0, %s157
    %s172 = sphi 0, %s158
    %s176 = sphi 0, %s176
    %s178 = sphi 0, %s176
    %s179 = sphi 0, %s178
    %s193 = sphi 0, %s179
    %s199 = sphi 0, %s201
    %s202 = sphi 0, %s199
    %s203 = sphi 0, %s202
    %s219 = sphi 0, %s203
  $region4: #{custom_gnn_forward.1} parent=0 // loop_header_branch
    %16 = sbr.rel (%p14) target = $region8
  $region5: #{custom_gnn_forward.1} parent=0 // loop_body
    %s18 = ssub.s32 %s13, 1
    %s19 = ssub.s32 %s13, 2
    %s26 = sadd.s32 1, %s21
    %p27 = scmp.ge.s32.totalorder %s26, 1
    %s28 = scalar_select %p27, 0, %s26
    %s29 = sadd.s32 1, %s20
    %s30 = scalar_select %p27, %s29, %s20
    %p31 = scmp.ge.s32.totalorder %s30, 8
    %s32 = scalar_select %p31, 0, %s30
    %s33 = ssub.s32 %s20, %s32
    %s34 = ssub.s32 %s21, %s28
    %s35 = sor.u32 %s33, %s34
    %p36 = scmp.eq.s32.totalorder %s35, 0
    %s38 = sadd.s32 %s37, 1
    %s39 = scalar_select %p36, %s37, %s38
    %p42 = pneg %p36
    %p43 = scmp.eq.s32.totalorder %s13, 7
    %p44 = por %p42, %p43
    %p45 = scmp.ne.s32.totalorder %s37, %s40
    %p46 = scmp.eq.s32.totalorder %s13, 0
    %p47 = por %p45, %p46
    %p48 = scmp.ne.s32.totalorder %s37, %s40
    %p49 = scmp.eq.s32.totalorder %s18, 7
    %p50 = por %p48, %p49
    %p51 = scmp.ne.s32.totalorder %s40, %s41
    %p52 = scmp.eq.s32.totalorder %s18, 0
    %p53 = por %p51, %p52
    %p54 = scmp.ne.s32.totalorder %s40, %s41
    %p55 = scmp.eq.s32.totalorder %s19, 7
    %p56 = por %p54, %p55
    %p58 = scmp.ne.s32.totalorder %s41, %s57
    %p59 = scmp.eq.s32.totalorder %s19, 0
    %p60 = por %p58, %p59
    %s61 = ssub.s32 %s21, %s28
    %p62 = scmp.eq.s32.totalorder %s61, 0
    %s64 = sadd.s32 %s63, 1
    %s65 = scalar_select %p62, %s63, %s64
    %p68 = pneg %p62
    %p69 = scmp.eq.s32.totalorder %s13, 7
    %p70 = por %p68, %p69
    %p71 = scmp.ne.s32.totalorder %s63, %s66
    %p72 = scmp.eq.s32.totalorder %s13, 0
    %p73 = por %p71, %p72
    %p74 = scmp.ne.s32.totalorder %s63, %s66
    %p75 = scmp.eq.s32.totalorder %s18, 7
    %p76 = por %p74, %p75
    %p77 = scmp.ne.s32.totalorder %s66, %s67
    %p78 = scmp.eq.s32.totalorder %s18, 0
    %p79 = por %p77, %p78
    %p80 = scmp.ne.s32.totalorder %s66, %s67
    %p81 = scmp.eq.s32.totalorder %s19, 7
    %p82 = por %p80, %p81
    %p84 = scmp.ne.s32.totalorder %s67, %s83
    %p85 = scmp.eq.s32.totalorder %s19, 0
    %p86 = por %p84, %p85
    %s87 = ssub.s32 %s20, %s32
    %p88 = scmp.eq.s32.totalorder %s87, 0
    %s90 = sadd.s32 %s89, 1
    %s91 = scalar_select %p88, %s89, %s90
    %p94 = pneg %p88
    %p95 = scmp.eq.s32.totalorder %s13, 7
    %p96 = por %p94, %p95
    %p97 = scmp.ne.s32.totalorder %s89, %s92
    %p98 = scmp.eq.s32.totalorder %s13, 0
    %p99 = por %p97, %p98
    %p100 = scmp.ne.s32.totalorder %s89, %s92
    %p101 = scmp.eq.s32.totalorder %s18, 7
    %p102 = por %p100, %p101
    %p103 = scmp.ne.s32.totalorder %s92, %s93
    %p104 = scmp.eq.s32.totalorder %s18, 0
    %p105 = por %p103, %p104
    %p106 = scmp.ne.s32.totalorder %s92, %s93
    %p107 = scmp.eq.s32.totalorder %s19, 7
    %p108 = por %p106, %p107
    %p110 = scmp.ne.s32.totalorder %s93, %s109
    %p111 = scmp.eq.s32.totalorder %s19, 0
    %p112 = por %p110, %p111
    %s114 = sadd.s32 %s113, 1
    %p117 = scmp.eq.s32.totalorder %s13, 7
    %p118 = scmp.ne.s32.totalorder %s113, %s115
    %p119 = scmp.eq.s32.totalorder %s13, 0
    %p120 = por %p118, %p119
    %p121 = scmp.ne.s32.totalorder %s113, %s115
    %p122 = scmp.eq.s32.totalorder %s18, 7
    %p123 = por %p121, %p122
    %p124 = scmp.ne.s32.totalorder %s115, %s116
    %p125 = scmp.eq.s32.totalorder %s18, 0
    %p126 = por %p124, %p125
    %p127 = scmp.ne.s32.totalorder %s115, %s116
    %p128 = scmp.eq.s32.totalorder %s19, 7
    %p129 = por %p127, %p128
    %p131 = scmp.ne.s32.totalorder %s116, %s130
    %p132 = scmp.eq.s32.totalorder %s19, 0
    %p133 = por %p131, %p132
    %s135 = sadd.s32 %s134, 1
    %p138 = scmp.eq.s32.totalorder %s13, 7
    %p139 = scmp.ne.s32.totalorder %s134, %s136
    %p140 = scmp.eq.s32.totalorder %s13, 0
    %p141 = por %p139, %p140
    %p142 = scmp.ne.s32.totalorder %s134, %s136
    %p143 = scmp.eq.s32.totalorder %s18, 7
    %p144 = por %p142, %p143
    %p145 = scmp.ne.s32.totalorder %s136, %s137
    %p146 = scmp.eq.s32.totalorder %s18, 0
    %p147 = por %p145, %p146
    %p148 = scmp.ne.s32.totalorder %s136, %s137
    %p149 = scmp.eq.s32.totalorder %s19, 7
    %p150 = por %p148, %p149
    %p152 = scmp.ne.s32.totalorder %s137, %s151
    %p153 = scmp.eq.s32.totalorder %s19, 0
    %p154 = por %p152, %p153
    %s156 = sadd.s32 %s155, 1
    %p159 = scmp.eq.s32.totalorder %s13, 7
    %p160 = scmp.ne.s32.totalorder %s155, %s157
    %p161 = scmp.eq.s32.totalorder %s13, 0
    %p162 = por %p160, %p161
    %p163 = scmp.ne.s32.totalorder %s155, %s157
    %p164 = scmp.eq.s32.totalorder %s18, 7
    %p165 = por %p163, %p164
    %p166 = scmp.ne.s32.totalorder %s157, %s158
    %p167 = scmp.eq.s32.totalorder %s18, 0
    %p168 = por %p166, %p167
    %p169 = scmp.ne.s32.totalorder %s157, %s158
    %p170 = scmp.eq.s32.totalorder %s19, 7
    %p171 = por %p169, %p170
    %p173 = scmp.ne.s32.totalorder %s158, %s172
    %p174 = scmp.eq.s32.totalorder %s19, 0
    %p175 = por %p173, %p174
    %s177 = sadd.s32 %s176, 1
    %p180 = scmp.eq.s32.totalorder %s13, 7
    %p181 = scmp.ne.s32.totalorder %s176, %s178
    %p182 = scmp.eq.s32.totalorder %s13, 0
    %p183 = por %p181, %p182
    %p184 = scmp.ne.s32.totalorder %s176, %s178
    %p185 = scmp.eq.s32.totalorder %s18, 7
    %p186 = por %p184, %p185
    %p187 = scmp.ne.s32.totalorder %s178, %s179
    %p188 = scmp.eq.s32.totalorder %s18, 0
    %p189 = por %p187, %p188
    %p190 = scmp.ne.s32.totalorder %s178, %s179
    %p191 = scmp.eq.s32.totalorder %s19, 7
    %p192 = por %p190, %p191
    %p194 = scmp.ne.s32.totalorder %s179, %s193
    %p195 = scmp.eq.s32.totalorder %s19, 0
    %p196 = por %p194, %p195
    %s197 = ssub.s32 %s20, %s32
    %p198 = scmp.eq.s32.totalorder %s197, 0
    %s200 = sadd.s32 %s199, 1
    %s201 = scalar_select %p198, %s199, %s200
    %p204 = pneg %p198
    %p205 = scmp.eq.s32.totalorder %s13, 7
    %p206 = por %p204, %p205
    %p207 = scmp.ne.s32.totalorder %s199, %s202
    %p208 = scmp.eq.s32.totalorder %s13, 0
    %p209 = por %p207, %p208
    %p210 = scmp.ne.s32.totalorder %s199, %s202
    %p211 = scmp.eq.s32.totalorder %s18, 7
    %p212 = por %p210, %p211
    %p213 = scmp.ne.s32.totalorder %s202, %s203
    %p214 = scmp.eq.s32.totalorder %s18, 0
    %p215 = por %p213, %p214
    %p216 = scmp.ne.s32.totalorder %s202, %s203
    %p217 = scmp.eq.s32.totalorder %s19, 7
    %p218 = por %p216, %p217
    %p220 = scmp.ne.s32.totalorder %s203, %s219
    %p221 = scmp.eq.s32.totalorder %s19, 0
    %p222 = por %p220, %p221
    %p223 = scmp.le.s32.totalorder 1, %s13
    %p224 = scmp.lt.s32.totalorder %s13, 9
    %p225 = pnand %p223, %p224
    %p226 = pneg %p225
    // Predicated region
    $region9: #{custom_gnn_forward.1} parent=5 // pred_check
      _
    $region10: #{custom_gnn_forward.1} parent=5 // pred_check_branch
      %228 = sbr.rel (%p225) target = $region12
    $region11: #{custom_gnn_forward.1} parent=5 // pred_region
      %s229 = ssub.s32 %s13, 1
      // Predicated region
      $region13: #{custom_gnn_forward.1} parent=11 // pred_check
        %p230 = pneg %p79
      $region14: #{custom_gnn_forward.1} parent=11 // pred_check_branch
        %232 = sbr.rel (%p230) target = $region16
      $region15: #{custom_gnn_forward.1} parent=11 // pred_region
        %s233 = smul.u32 16, %s23
        %p234 = scmp.lt.s32.totalorder %s233, 15
        %s235 = scalar_select %p234, %s233, 15
        %s236 = smul.addr %s235, 8
        %s237 = scalar_lea.vmem %s1, %s236
        %s238 = smul.u32 16, %s23
      $region16: #{custom_gnn_forward.1} parent=11 // pred_fallthru
        _
      // Predicated region
      $region17: #{custom_gnn_forward.1} parent=11 // pred_check
        %p239 = pneg %p126
      $region18: #{custom_gnn_forward.1} parent=11 // pred_check_branch
        %241 = sbr.rel (%p239) target = $region20
      $region19: #{custom_gnn_forward.1} parent=11 // pred_region
        _
      $region20: #{custom_gnn_forward.1} parent=11 // pred_fallthru
        _
      // Predicated region
      $region21: #{custom_gnn_forward.1} parent=11 // pred_check
        %p242 = pneg %p147
      $region22: #{custom_gnn_forward.1} parent=11 // pred_check_branch
        %244 = sbr.rel (%p242) target = $region24
      $region23: #{custom_gnn_forward.1} parent=11 // pred_region
        _
      $region24: #{custom_gnn_forward.1} parent=11 // pred_fallthru
        _
      // Predicated region
      $region25: #{custom_gnn_forward.1} parent=11 // pred_check
        %p245 = pneg %p168
      $region26: #{custom_gnn_forward.1} parent=11 // pred_check_branch
        %247 = sbr.rel (%p245) target = $region28
      $region27: #{custom_gnn_forward.1} parent=11 // pred_region
        _
      $region28: #{custom_gnn_forward.1} parent=11 // pred_fallthru
        _
      // Predicated region
      $region29: #{custom_gnn_forward.1} parent=11 // pred_check
        %p248 = pneg %p189
      $region30: #{custom_gnn_forward.1} parent=11 // pred_check_branch
        %250 = sbr.rel (%p248) target = $region32
      $region31: #{custom_gnn_forward.1} parent=11 // pred_region
        _
      $region32: #{custom_gnn_forward.1} parent=11 // pred_fallthru
        _
    $region12: #{custom_gnn_forward.1} parent=5 // pred_fallthru
      _
    %p251 = scmp.lt.s32.totalorder %s13, 8
    // Predicated region
    $region33: #{custom_gnn_forward.1} parent=5 // pred_check
      %p252 = pneg %p251
    $region34: #{custom_gnn_forward.1} parent=5 // pred_check_branch
      %254 = sbr.rel (%p252) target = $region36
    $region35: #{custom_gnn_forward.1} parent=5 // pred_region
      // Predicated region
      $region37: #{custom_gnn_forward.1} parent=35 // pred_check
        %p255 = pneg %p47
      $region38: #{custom_gnn_forward.1} parent=35 // pred_check_branch
        %257 = sbr.rel (%p255) target = $region40
      $region39: #{custom_gnn_forward.1} parent=35 // pred_region
        %s258 = smul.u32 2, %s20
        %p259 = scmp.lt.s32.totalorder %s258, 15
        %s260 = scalar_select %p259, %s258, 15
        %p261 = scmp.lt.s32.totalorder %s21, 0
        %s262 = scalar_select %p261, %s21, 0
        %s263 = sadd.s32 %s262, %s260
        %s264 = smul.addr %s263, 8
        %s265 = scalar_lea.vmem %s0, %s264
        %s266 = smul.u32 2, %s20
      $region40: #{custom_gnn_forward.1} parent=35 // pred_fallthru
        _
      // Predicated region
      $region41: #{custom_gnn_forward.1} parent=35 // pred_check
        %p267 = pneg %p99
      $region42: #{custom_gnn_forward.1} parent=35 // pred_check_branch
        %269 = sbr.rel (%p267) target = $region44
      $region43: #{custom_gnn_forward.1} parent=35 // pred_region
        %s270 = smul.u32 2, %s20
        %p271 = scmp.lt.s32.totalorder %s270, 15
        %s272 = scalar_select %p271, %s270, 15
        %s273 = smul.addr %s272, 8
        %s274 = scalar_lea.vmem %s2, %s273
        %s275 = smul.u32 2, %s20
      $region44: #{custom_gnn_forward.1} parent=35 // pred_fallthru
        _
    $region36: #{custom_gnn_forward.1} parent=5 // pred_fallthru
      _
    %p276 = scmp.le.s32.totalorder 1, %s13
    %p277 = scmp.lt.s32.totalorder %s13, 9
    %p278 = pnand %p276, %p277
    %p279 = pneg %p278
    // Predicated region
    $region45: #{custom_gnn_forward.1} parent=5 // pred_check
      _
    $region46: #{custom_gnn_forward.1} parent=5 // pred_check_branch
      %281 = sbr.rel (%p278) target = $region48
    $region47: #{custom_gnn_forward.1} parent=5 // pred_region
      %s282 = ssub.s32 %s13, 1
      %s283 = smul.u32 2, %s22
      %p284 = scmp.lt.s32.totalorder %s283, 15
      %s285 = scalar_select %p284, %s283, 15
      %p286 = scmp.lt.s32.totalorder %s23, 0
      %s287 = scalar_select %p286, %s23, 0
      %s288 = sadd.s32 %s287, %s285
      %s289 = smul.addr %s288, 8
      %s290 = scalar_lea.vmem %s0, %s289
      %p291 = pneg %p53
      %p292 = pneg %p50
      %s293 = smul.u32 16, %s23
      %p294 = scmp.lt.s32.totalorder %s293, 15
      %s295 = scalar_select %p294, %s293, 15
      %s296 = smul.addr %s295, 8
      %s297 = scalar_lea.vmem %s1, %s296
      %p298 = pneg %p79
      %p299 = pneg %p76
      %s300 = smul.u32 2, %s22
      %p301 = scmp.lt.s32.totalorder %s300, 15
      %s302 = scalar_select %p301, %s300, 15
      %s303 = smul.addr %s302, 8
      %s304 = scalar_lea.vmem %s2, %s303
      %p305 = pneg %p105
      %p306 = pneg %p102
      %p307 = pneg %p126
      %p308 = pneg %p123
      %p309 = pneg %p147
      %p310 = pneg %p144
      %p311 = pneg %p168
      %p312 = pneg %p165
      %p313 = pneg %p189
      %p314 = pneg %p186
      %p315 = pneg %p215
      %p316 = pneg %p212
      %s317 = smul.u32 2, %s22
      %p318 = scmp.lt.s32.totalorder %s317, 15
      %s319 = scalar_select %p318, %s317, 15
      %s320 = smul.addr %s319, 8
      %s321 = scalar_lea.vmem %s7, %s320
      %s322 = smul.u32 2, %s22
      %p323 = scmp.lt.s32.totalorder %s322, 15
      %s324 = scalar_select %p323, %s322, 15
      %p325 = scmp.lt.s32.totalorder %s23, 0
      %s326 = scalar_select %p325, %s23, 0
      %s327 = sadd.s32 %s326, %s324
      %s328 = smul.addr %s327, 8
      %s329 = scalar_lea.vmem %s0, %s328
      %s330 = smul.u32 2, %s22
      %s331 = smul.u32 16, %s23
      %p332 = scmp.lt.s32.totalorder %s331, 15
      %s333 = scalar_select %p332, %s331, 15
      %s334 = smul.addr %s333, 8
      %s335 = scalar_lea.vmem %s1, %s334
      %s336 = smul.u32 16, %s23
      %s337 = smul.u32 2, %s22
      %p338 = scmp.lt.s32.totalorder %s337, 15
      %s339 = scalar_select %p338, %s337, 15
      %s340 = smul.addr %s339, 8
      %s341 = scalar_lea.vmem %s2, %s340
      %s342 = smul.u32 2, %s22
      %s343 = smul.u32 2, %s22
      %p344 = scmp.lt.s32.totalorder %s343, 15
      %s345 = scalar_select %p344, %s343, 15
      %s346 = smul.addr %s345, 8
      %s347 = scalar_lea.vmem %s7, %s346
      %s348 = smul.u32 2, %s22
      %p349 = scmp.eq.s32.totalorder %s23, 0
      // Predicated region
      $region49: #{custom_gnn_forward.1} parent=47 // pred_check
        %p350 = pneg %p349
      $region50: #{custom_gnn_forward.1} parent=47 // pred_check_branch
        %352 = sbr.rel (%p350) target = $region52
      $region51: #{custom_gnn_forward.1} parent=47 // pred_region
        %353 = vst [vmem:[#allocation2] sm:$0xff] 0.0
        %354 = vst [vmem:[#allocation2 + $0x8] sm:$0xff] 0.0
      $region52: #{custom_gnn_forward.1} parent=47 // pred_fallthru
        _
      %v355 = vld [vmem:[#allocation2] sm:$0xff]
      %v356 = vld [vmem:[#allocation2 + $0x8] sm:$0xff]
      %v357 = vld [vmem:[%s329] sm:$0xff]
      %v358 = vld [vmem:[%s329 + $0x8] sm:$0xff]
      %v359 = vld [vmem:[%s335] sm:$0xff]
      %v360 = vld [vmem:[%s335 + $0x8] sm:$0xff]
      %v361 = vld [vmem:[%s335 + $0x10] sm:$0xff]
      %v362 = vld [vmem:[%s335 + $0x18] sm:$0xff]
      %v363 = vld [vmem:[%s335 + $0x20] sm:$0xff]
      %v364 = vld [vmem:[%s335 + $0x28] sm:$0xff]
      %v365 = vld [vmem:[%s335 + $0x30] sm:$0xff]
      %v366 = vld [vmem:[%s335 + $0x38] sm:$0xff]
      %v367 = vld [vmem:[%s335 + $0x40] sm:$0xff]
      %v368 = vld [vmem:[%s335 + $0x48] sm:$0xff]
      %v369 = vld [vmem:[%s335 + $0x50] sm:$0xff]
      %v370 = vld [vmem:[%s335 + $0x58] sm:$0xff]
      %v371 = vld [vmem:[%s335 + $0x60] sm:$0xff]
      %v372 = vld [vmem:[%s335 + $0x68] sm:$0xff]
      %v373 = vld [vmem:[%s335 + $0x70] sm:$0xff]
      %v374 = vld [vmem:[%s335 + $0x78] sm:$0xff]
      %375 = vmatprep.subr.mxu0 0.0
      %376 = vmatpush1.msra.mxu0 %v359
      %377 = vmatprep.subr.mxu0 0.0
      %378 = vmatpush1.msra.mxu0 %v360
      %379 = vmatprep.subr.mxu0 0.0
      %380 = vmatpush1.msra.mxu0 %v361
      %381 = vmatprep.subr.mxu0 0.0
      %382 = vmatpush1.msra.mxu0 %v362
      %383 = vmatprep.subr.mxu0 0.0
      %384 = vmatpush1.msra.mxu0 %v363
      %385 = vmatprep.subr.mxu0 0.0
      %386 = vmatpush1.msra.mxu0 %v364
      %387 = vmatprep.subr.mxu0 0.0
      %388 = vmatpush1.msra.mxu0 %v365
      %389 = vmatprep.subr.mxu0 0.0
      %390 = vmatpush1.msra.mxu0 %v366
      %391 = vmatprep.subr.mxu0 0.0
      %392 = vmatpush1.msra.mxu0 %v367
      %393 = vmatprep.subr.mxu0 0.0
      %394 = vmatpush1.msra.mxu0 %v368
      %395 = vmatprep.subr.mxu0 0.0
      %396 = vmatpush1.msra.mxu0 %v369
      %397 = vmatprep.subr.mxu0 0.0
      %398 = vmatpush1.msra.mxu0 %v370
      %399 = vmatprep.subr.mxu0 0.0
      %400 = vmatpush1.msra.mxu0 %v371
      %401 = vmatprep.subr.mxu0 0.0
      %402 = vmatpush1.msra.mxu0 %v372
      %403 = vmatprep.subr.mxu0 0.0
      %404 = vmatpush1.msra.mxu0 %v373
      %405 = vmatprep.subr.mxu0 0.0
      %406 = vmatpush1.msra.mxu0 %v374
      %407 = vmatprep.subr.mxu0 0.0
      %408 = vmatpush1.msra.mxu0 0.0
      %409 = vmatprep.subr.mxu0 0.0
      %410 = vmatpush1.msra.mxu0 0.0
      %411 = vmatprep.subr.mxu0 0.0
      %412 = vmatpush1.msra.mxu0 0.0
      %413 = vmatprep.subr.mxu0 0.0
      %414 = vmatpush1.msra.mxu0 0.0
      %415 = vmatprep.subr.mxu0 0.0
      %416 = vmatpush1.msra.mxu0 0.0
      %417 = vmatprep.subr.mxu0 0.0
      %418 = vmatpush1.msra.mxu0 0.0
      %419 = vmatprep.subr.mxu0 0.0
      %420 = vmatpush1.msra.mxu0 0.0
      %421 = vmatprep.subr.mxu0 0.0
      %422 = vmatpush1.msra.mxu0 0.0
      %423 = vmatprep.subr.mxu0 0.0
      %424 = vmatpush1.msra.mxu0 0.0
      %425 = vmatprep.subr.mxu0 0.0
      %426 = vmatpush1.msra.mxu0 0.0
      %427 = vmatprep.subr.mxu0 0.0
      %428 = vmatpush1.msra.mxu0 0.0
      %429 = vmatprep.subr.mxu0 0.0
      %430 = vmatpush1.msra.mxu0 0.0
      %431 = vmatprep.subr.mxu0 0.0
      %432 = vmatpush1.msra.mxu0 0.0
      %433 = vmatprep.subr.mxu0 0.0
      %434 = vmatpush1.msra.mxu0 0.0
      %435 = vmatprep.subr.mxu0 0.0
      %436 = vmatpush1.msra.mxu0 0.0
      %437 = vmatprep.subr.mxu0 0.0
      %438 = vmatpush1.msra.mxu0 0.0
      %439 = vmatprep.mubr.f32.mxu0 0.0
      %440 = vmatmul.mubr.f32.gmra.mrb[0].mxu0 %v357
      %v441 = vpop.f32.mrb[0].mxu0
      %v442 = vadd.f32 0.0, %v441
      %v443 = vpop.f32.mrb[0].mxu0
      %444 = vmatprep.mubr.f32.mxu0 0.0
      %445 = vmatmul.mubr.f32.gmra.mrb[0].mxu0 %v358
      %v446 = vpop.f32.mrb[0].mxu0
      %v447 = vadd.f32 0.0, %v446
      %v448 = vpop.f32.mrb[0].mxu0
      %449 = vdwg.mxu0
      %v450 = vadd.f32 %v355, %v442
      %v451 = vadd.f32 %v356, %v447
      %452 = vst [vmem:[#allocation2] sm:$0xff] %v450
      %453 = vst [vmem:[#allocation2 + $0x8] sm:$0xff] %v451
      // Predicated region
      $region53: #{custom_gnn_forward.1} parent=47 // pred_check
        %p454 = pneg %p349
      $region54: #{custom_gnn_forward.1} parent=47 // pred_check_branch
        %456 = sbr.rel (%p454) target = $region56
      $region55: #{custom_gnn_forward.1} parent=47 // pred_region
        %v457 = vld [vmem:[#allocation2] sm:$0xff]
        %v458 = vld [vmem:[#allocation2 + $0x8] sm:$0xff]
        %v459 = vld [vmem:[%s341] sm:$0xff]
        %v460 = vld [vmem:[%s341 + $0x8] sm:$0xff]
        %v461 = vadd.f32 %v457, %v459
        %v462 = vadd.f32 %v458, %v460
        %v463 = vmax.f32 %v461, 0.0
        %v464 = vmax.f32 %v462, 0.0
        %v465 = vld [vmem:[%s3] sm:$0xff]
        %v466 = vld [vmem:[%s3 + $0x8] sm:$0xff]
        %v467 = vld [vmem:[%s3 + $0x10] sm:$0xff]
        %v468 = vld [vmem:[%s3 + $0x18] sm:$0xff]
        %v469 = vld [vmem:[%s3 + $0x20] sm:$0xff]
        %v470 = vld [vmem:[%s3 + $0x28] sm:$0xff]
        %v471 = vld [vmem:[%s3 + $0x30] sm:$0xff]
        %v472 = vld [vmem:[%s3 + $0x38] sm:$0xff]
        %v473 = vld [vmem:[%s3 + $0x40] sm:$0xff]
        %v474 = vld [vmem:[%s3 + $0x48] sm:$0xff]
        %v475 = vld [vmem:[%s3 + $0x50] sm:$0xff]
        %v476 = vld [vmem:[%s3 + $0x58] sm:$0xff]
        %v477 = vld [vmem:[%s3 + $0x60] sm:$0xff]
        %v478 = vld [vmem:[%s3 + $0x68] sm:$0xff]
        %v479 = vld [vmem:[%s3 + $0x70] sm:$0xff]
        %v480 = vld [vmem:[%s3 + $0x78] sm:$0xff]
        %v481 = vld [vmem:[%s4] sm:$0x1]
        %v483 = vlaneseq
        %v484 = vshrl.u32 %v483, 7
        %v485 = vsub.s32 0, %v484
        %v486 = vrot.slane %v481, %v485
        %488 = vmatprep.subr.mxu0 0.0
        %489 = vmatpush1.msra.mxu0 %v465
        %490 = vmatprep.subr.mxu0 0.0
        %491 = vmatpush1.msra.mxu0 %v466
        %492 = vmatprep.subr.mxu0 0.0
        %493 = vmatpush1.msra.mxu0 %v467
        %494 = vmatprep.subr.mxu0 0.0
        %495 = vmatpush1.msra.mxu0 %v468
        %496 = vmatprep.subr.mxu0 0.0
        %497 = vmatpush1.msra.mxu0 %v469
        %498 = vmatprep.subr.mxu0 0.0
        %499 = vmatpush1.msra.mxu0 %v470
        %500 = vmatprep.subr.mxu0 0.0
        %501 = vmatpush1.msra.mxu0 %v471
        %502 = vmatprep.subr.mxu0 0.0
        %503 = vmatpush1.msra.mxu0 %v472
        %504 = vmatprep.subr.mxu0 0.0
        %505 = vmatpush1.msra.mxu0 %v473
        %506 = vmatprep.subr.mxu0 0.0
        %507 = vmatpush1.msra.mxu0 %v474
        %508 = vmatprep.subr.mxu0 0.0
        %509 = vmatpush1.msra.mxu0 %v475
        %510 = vmatprep.subr.mxu0 0.0
        %511 = vmatpush1.msra.mxu0 %v476
        %512 = vmatprep.subr.mxu0 0.0
        %513 = vmatpush1.msra.mxu0 %v477
        %514 = vmatprep.subr.mxu0 0.0
        %515 = vmatpush1.msra.mxu0 %v478
        %516 = vmatprep.subr.mxu0 0.0
        %517 = vmatpush1.msra.mxu0 %v479
        %518 = vmatprep.subr.mxu0 0.0
        %519 = vmatpush1.msra.mxu0 %v480
        %520 = vmatprep.subr.mxu0 0.0
        %521 = vmatpush1.msra.mxu0 0.0
        %522 = vmatprep.subr.mxu0 0.0
        %523 = vmatpush1.msra.mxu0 0.0
        %524 = vmatprep.subr.mxu0 0.0
        %525 = vmatpush1.msra.mxu0 0.0
        %526 = vmatprep.subr.mxu0 0.0
        %527 = vmatpush1.msra.mxu0 0.0
        %528 = vmatprep.subr.mxu0 0.0
        %529 = vmatpush1.msra.mxu0 0.0
        %530 = vmatprep.subr.mxu0 0.0
        %531 = vmatpush1.msra.mxu0 0.0
        %532 = vmatprep.subr.mxu0 0.0
        %533 = vmatpush1.msra.mxu0 0.0
        %534 = vmatprep.subr.mxu0 0.0
        %535 = vmatpush1.msra.mxu0 0.0
        %536 = vmatprep.subr.mxu0 0.0
        %537 = vmatpush1.msra.mxu0 0.0
        %538 = vmatprep.subr.mxu0 0.0
        %539 = vmatpush1.msra.mxu0 0.0
        %540 = vmatprep.subr.mxu0 0.0
        %541 = vmatpush1.msra.mxu0 0.0
        %542 = vmatprep.subr.mxu0 0.0
        %543 = vmatpush1.msra.mxu0 0.0
        %544 = vmatprep.subr.mxu0 0.0
        %545 = vmatpush1.msra.mxu0 0.0
        %546 = vmatprep.subr.mxu0 0.0
        %547 = vmatpush1.msra.mxu0 0.0
        %548 = vmatprep.subr.mxu0 0.0
        %549 = vmatpush1.msra.mxu0 0.0
        %550 = vmatprep.subr.mxu0 0.0
        %551 = vmatpush1.msra.mxu0 0.0
        %552 = vmatprep.mubr.f32.mxu0 0.0
        %553 = vmatmul.mubr.f32.gmra.mrb[0].mxu0 %v463
        %v554 = vpop.f32.mrb[0].mxu0
        %v555 = vadd.f32 %v486, %v554
        %v556 = vpop.f32.mrb[0].mxu0
        %557 = vmatprep.mubr.f32.mxu0 0.0
        %558 = vmatmul.mubr.f32.gmra.mrb[0].mxu0 %v464
        %v559 = vpop.f32.mrb[0].mxu0
        %v560 = vadd.f32 %v486, %v559
        %v561 = vpop.f32.mrb[0].mxu0
        %562 = vdwg.mxu0
        %v563 = vmax.f32 %v555, 0.0
        %v564 = vmax.f32 %v560, 0.0
        %v565 = vld [vmem:[%s5] sm:$0xff]
        %v566 = vld [vmem:[%s5 + $0x8] sm:$0xff]
        %v567 = vld [vmem:[%s5 + $0x10] sm:$0xff]
        %v568 = vld [vmem:[%s5 + $0x18] sm:$0xff]
        %v569 = vld [vmem:[%s5 + $0x20] sm:$0xff]
        %v570 = vld [vmem:[%s5 + $0x28] sm:$0xff]
        %v571 = vld [vmem:[%s5 + $0x30] sm:$0xff]
        %v572 = vld [vmem:[%s5 + $0x38] sm:$0xff]
        %v573 = vld [vmem:[%s5 + $0x40] sm:$0xff]
        %v574 = vld [vmem:[%s5 + $0x48] sm:$0xff]
        %v575 = vld [vmem:[%s5 + $0x50] sm:$0xff]
        %v576 = vld [vmem:[%s5 + $0x58] sm:$0xff]
        %v577 = vld [vmem:[%s5 + $0x60] sm:$0xff]
        %v578 = vld [vmem:[%s5 + $0x68] sm:$0xff]
        %v579 = vld [vmem:[%s5 + $0x70] sm:$0xff]
        %v580 = vld [vmem:[%s5 + $0x78] sm:$0xff]
        %v581 = vld [vmem:[%s6] sm:$0x1]
        %v583 = vlaneseq
        %v584 = vshrl.u32 %v583, 7
        %v585 = vsub.s32 0, %v584
        %v586 = vrot.slane %v581, %v585
        %588 = vmatprep.subr.mxu0 0.0
        %589 = vmatpush1.msra.mxu0 %v565
        %590 = vmatprep.subr.mxu0 0.0
        %591 = vmatpush1.msra.mxu0 %v566
        %592 = vmatprep.subr.mxu0 0.0
        %593 = vmatpush1.msra.mxu0 %v567
        %594 = vmatprep.subr.mxu0 0.0
        %595 = vmatpush1.msra.mxu0 %v568
        %596 = vmatprep.subr.mxu0 0.0
        %597 = vmatpush1.msra.mxu0 %v569
        %598 = vmatprep.subr.mxu0 0.0
        %599 = vmatpush1.msra.mxu0 %v570
        %600 = vmatprep.subr.mxu0 0.0
        %601 = vmatpush1.msra.mxu0 %v571
        %602 = vmatprep.subr.mxu0 0.0
        %603 = vmatpush1.msra.mxu0 %v572
        %604 = vmatprep.subr.mxu0 0.0
        %605 = vmatpush1.msra.mxu0 %v573
        %606 = vmatprep.subr.mxu0 0.0
        %607 = vmatpush1.msra.mxu0 %v574
        %608 = vmatprep.subr.mxu0 0.0
        %609 = vmatpush1.msra.mxu0 %v575
        %610 = vmatprep.subr.mxu0 0.0
        %611 = vmatpush1.msra.mxu0 %v576
        %612 = vmatprep.subr.mxu0 0.0
        %613 = vmatpush1.msra.mxu0 %v577
        %614 = vmatprep.subr.mxu0 0.0
        %615 = vmatpush1.msra.mxu0 %v578
        %616 = vmatprep.subr.mxu0 0.0
        %617 = vmatpush1.msra.mxu0 %v579
        %618 = vmatprep.subr.mxu0 0.0
        %619 = vmatpush1.msra.mxu0 %v580
        %620 = vmatprep.subr.mxu0 0.0
        %621 = vmatpush1.msra.mxu0 0.0
        %622 = vmatprep.subr.mxu0 0.0
        %623 = vmatpush1.msra.mxu0 0.0
        %624 = vmatprep.subr.mxu0 0.0
        %625 = vmatpush1.msra.mxu0 0.0
        %626 = vmatprep.subr.mxu0 0.0
        %627 = vmatpush1.msra.mxu0 0.0
        %628 = vmatprep.subr.mxu0 0.0
        %629 = vmatpush1.msra.mxu0 0.0
        %630 = vmatprep.subr.mxu0 0.0
        %631 = vmatpush1.msra.mxu0 0.0
        %632 = vmatprep.subr.mxu0 0.0
        %633 = vmatpush1.msra.mxu0 0.0
        %634 = vmatprep.subr.mxu0 0.0
        %635 = vmatpush1.msra.mxu0 0.0
        %636 = vmatprep.subr.mxu0 0.0
        %637 = vmatpush1.msra.mxu0 0.0
        %638 = vmatprep.subr.mxu0 0.0
        %639 = vmatpush1.msra.mxu0 0.0
        %640 = vmatprep.subr.mxu0 0.0
        %641 = vmatpush1.msra.mxu0 0.0
        %642 = vmatprep.subr.mxu0 0.0
        %643 = vmatpush1.msra.mxu0 0.0
        %644 = vmatprep.subr.mxu0 0.0
        %645 = vmatpush1.msra.mxu0 0.0
        %646 = vmatprep.subr.mxu0 0.0
        %647 = vmatpush1.msra.mxu0 0.0
        %648 = vmatprep.subr.mxu0 0.0
        %649 = vmatpush1.msra.mxu0 0.0
        %650 = vmatprep.subr.mxu0 0.0
        %651 = vmatpush1.msra.mxu0 0.0
        %652 = vmatprep.mubr.f32.mxu0 0.0
        %653 = vmatmul.mubr.f32.gmra.mrb[0].mxu0 %v563
        %v654 = vpop.f32.mrb[0].mxu0
        %v655 = vadd.f32 %v586, %v654
        %v656 = vpop.f32.mrb[0].mxu0
        %657 = vmatprep.mubr.f32.mxu0 0.0
        %658 = vmatmul.mubr.f32.gmra.mrb[0].mxu0 %v564
        %v659 = vpop.f32.mrb[0].mxu0
        %v660 = vadd.f32 %v586, %v659
        %v661 = vpop.f32.mrb[0].mxu0
        %662 = vdwg.mxu0
        %663 = vst [vmem:[%s347] sm:$0xff] %v655
        %664 = vst [vmem:[%s347 + $0x8] sm:$0xff] %v660
      $region56: #{custom_gnn_forward.1} parent=47 // pred_fallthru
        _
      %s665 = smul.u32 2, %s22
      %p666 = scmp.lt.s32.totalorder %s665, 15
      %s667 = scalar_select %p666, %s665, 15
      %s668 = smul.addr %s667, 8
      %s669 = scalar_lea.vmem %s7, %s668
      // Predicated region
      $region57: #{custom_gnn_forward.1} parent=47 // pred_check
        %p670 = pneg %p212
      $region58: #{custom_gnn_forward.1} parent=47 // pred_check_branch
        %672 = sbr.rel (%p670) target = $region60
      $region59: #{custom_gnn_forward.1} parent=47 // pred_region
        %s673 = smul.u32 2, %s22
      $region60: #{custom_gnn_forward.1} parent=47 // pred_fallthru
        _
    $region48: #{custom_gnn_forward.1} parent=5 // pred_fallthru
      _
    %p674 = scmp.le.s32.totalorder 2, %s13
    // Predicated region
    $region61: #{custom_gnn_forward.1} parent=5 // pred_check
      %p675 = pneg %p674
    $region62: #{custom_gnn_forward.1} parent=5 // pred_check_branch
      %677 = sbr.rel (%p675) target = $region64
    $region63: #{custom_gnn_forward.1} parent=5 // pred_region
      %s678 = ssub.s32 %s13, 2
      // Predicated region
      $region65: #{custom_gnn_forward.1} parent=63 // pred_check
        %p679 = pneg %p218
      $region66: #{custom_gnn_forward.1} parent=63 // pred_check_branch
        %681 = sbr.rel (%p679) target = $region68
      $region67: #{custom_gnn_forward.1} parent=63 // pred_region
        %s682 = smul.u32 2, %s24
        %p683 = scmp.lt.s32.totalorder %s682, 15
        %s684 = scalar_select %p683, %s682, 15
        %s685 = smul.addr %s684, 8
        %s686 = scalar_lea.vmem %s7, %s685
      $region68: #{custom_gnn_forward.1} parent=63 // pred_fallthru
        _
    $region64: #{custom_gnn_forward.1} parent=5 // pred_fallthru
      _
  $region6: #{custom_gnn_forward.1} parent=0 // loop_footer
    %s17 = sadd.s32 1, %s13
  $region7: #{custom_gnn_forward.1} parent=0 // loop_footer_branch
    %12 = sbr.rel target = $region3
  $region8: #{custom_gnn_forward.1} parent=0 // loop_exit
    _

</llo_original>
